<compile_context>
chip_gen: v7x
topology: tpu7x:2x2x1
jax: 0.10.0
libtpu: 0.0.40
codegen_flags: <defaults>
</compile_context>

<pallas_src>
import math

import jax
import jax.numpy as jnp
from jax.experimental import pallas as pl
from jax.experimental.pallas import tpu as pltpu

_BN_EPS = 1e-5


# ----------------------------------------------------------------------------
# Hardware / tiling helpers
# ----------------------------------------------------------------------------
def _vmem_cap():
    """~75% of per-core VMEM (48 MiB on v7x, 96 MiB on v5e/v6e)."""
    try:
        info = pltpu.get_tpu_info()
        capacity = int(getattr(info, "vmem_capacity_bytes", 128 << 20))
    except Exception:
        capacity = 128 << 20
    return (capacity * 3) // 4


def _pick_stats_tile(M, C, cap):
    """Largest multiple-of-8 divisor of M giving >=2 steps and ~<1/3 VMEM."""
    per_row_bytes = (4 + 4 + 1) * C          # s f32 + t f32 + keep int8
    budget = max(cap // 3, 1 << 20)
    hi = min(M, 4096)
    hi -= hi % 8
    for tm in range(hi, 7, -8):
        if M % tm == 0 and M // tm >= 2 and 2 * tm * per_row_bytes <= budget:
            return tm
    # TODO(synk): masked ragged tiles for awkward M instead of one full block.
    return M


def _fused_vmem_budget(TH, W, C):
    f32, bf16, i8 = 4, 2, 1
    act, halo = TH * W * C, 2 * W * C
    per = 2 * 2 * act * f32                  # s_center, t_center (double-buffered)
    per += 2 * 2 * act * i8                  # keep, mat center
    per += 2 * 2 * halo * f32                # s halo views
    per += 2 * 2 * halo * i8                 # mat halo views
    per += 2 * 8 * C * f32                   # packed stats
    per += 2 * 2 * 9 * C * C * bf16          # w1, w2
    per += (TH + 4) * (W + 2) * C * f32      # padded scratch
    per += 6 * (TH + 2) * W * C * f32        # conv temporaries headroom
    per += 4 << 20                           # fixed slack
    return per


def _pick_row_tile(H, W, C, cap):
    cands = [c for c in (128, 64, 32, 16, 8) if c <= H and H % c == 0]
    for th in cands:                          # prefer >=2 row tiles (pipelining)
        if H // th >= 2 and _fused_vmem_budget(th, W, C) <= cap:
            return th
    for th in cands:
        if _fused_vmem_budget(th, W, C) <= cap:
            return th
    return cands[-1] if cands else H


# ----------------------------------------------------------------------------
# Kernel A: tiled per-channel BatchNorm statistics for S and dropout(T).
# Resident (8, C) f32 accumulator per shard; rows = [sum_s, sumsq_s, sum_t,
# sumsq_t, 0...].  Grid = (shards, tiles): ("parallel", "arbitrary").
# ----------------------------------------------------------------------------
def _make_bn_stats_kernel(inv_keep):
    def kernel(s_ref, t_ref, keep_ref, stats_ref):
        i = pl.program_id(1)

        @pl.when(i == 0)
        def _():
            stats_ref[...] = jnp.zeros_like(stats_ref)

        s = s_ref[...]
        t = t_ref[...] * (keep_ref[...].astype(jnp.float32) * inv_keep)
        stats_ref[0:1, :] += jnp.sum(s, axis=0, keepdims=True)
        stats_ref[1:2, :] += jnp.sum(s * s, axis=0, keepdims=True)
        stats_ref[2:3, :] += jnp.sum(t, axis=0, keepdims=True)
        stats_ref[3:4, :] += jnp.sum(t * t, axis=0, keepdims=True)
        # TODO(synk): shifted/Welford accumulation if features have mean >> std.

    return kernel


def bn_stats(s2, t2, keep2, inv_keep):
    M, C = s2.shape
    cap = _vmem_cap()
    tm = _pick_stats_tile(M, C, cap)
    steps_total = M // tm
    ns = 2 if (steps_total % 2 == 0 and steps_total >= 4) else 1
    steps = steps_total // ns

    def row_map(c, i):
        return (c * steps + i, 0)

    return pl.pallas_call(
        _make_bn_stats_kernel(inv_keep),
        out_shape=jax.ShapeDtypeStruct((ns * 8, C), jnp.float32),
        grid_spec=pltpu.PrefetchScalarGridSpec(
            num_scalar_prefetch=0,
            grid=(ns, steps),
            in_specs=[pl.BlockSpec((tm, C), row_map),
                      pl.BlockSpec((tm, C), row_map),
                      pl.BlockSpec((tm, C), row_map)],
            out_specs=pl.BlockSpec((8, C), lambda c, i: (c, 0))),
        compiler_params=pltpu.CompilerParams(
            dimension_semantics=("parallel", "arbitrary"),
            vmem_limit_bytes=cap),
    )(s2, t2, keep2)


# ----------------------------------------------------------------------------
# Kernel B: fused normalise(S,T) + dropout(T) + spatial mask(S)
#           + MaskModule (conv3x3 -> ReLU -> conv3x3, SAME, 9-tap bf16 matmul)
#           + per-(image, row-tile) sum((new_fea - T_norm)^2).
# Grid = (N, H//TH), both "parallel".  The 2-row halo of masked-normalised S
# comes from two extra 2-row block views (index_map-clamped at the edges and
# zeroed in-kernel so SAME zero-padding is exact).
# ----------------------------------------------------------------------------
def _make_fused_kernel(TH, W, C, inv_keep):
    R1 = TH + 2      # conv1 output rows (1-row halo each side for conv2)

    def kernel(s_ref, st_ref, sb_ref, t_ref, keep_ref,
               mat_ref, mt_ref, mb_ref, stats_ref, w1_ref, w2_ref,
               loss_ref, pads):
        j = pl.program_id(1)
        nt = pl.num_programs(1)
        vt = jnp.where(j > 0, 1.0, 0.0).astype(jnp.float32)       # top halo valid
        vb = jnp.where(j < nt - 1, 1.0, 0.0).astype(jnp.float32)  # bottom halo valid

        s_mu = stats_ref[0:1, :].reshape(1, 1, C)
        s_sc = stats_ref[1:2, :].reshape(1, 1, C)
        t_mu = stats_ref[2:3, :].reshape(1, 1, C)
        t_sc = stats_ref[3:4, :].reshape(1, 1, C)
        b1 = stats_ref[4:5, :]
        b2 = stats_ref[5:6, :]

        def norm_mask_s(raw, m_i8):
            return (raw - s_mu) * s_sc * m_i8.astype(jnp.float32)

        # SAME padding in W: zero the left/right padding columns every step
        # (safe under a "parallel" grid split; each core owns its scratch).
        zcol = jnp.zeros((TH + 4, 1, C), jnp.float32)
        pads[:, 0:1, :] = zcol
        pads[:, W + 1:W + 2, :] = zcol

        # Masked, normalised S (2-row halos; zeroed beyond the image).
        pads[0:2, 1:W + 1, :] = norm_mask_s(st_ref[0], mt_ref[0]) * vt
        pads[2:TH + 2, 1:W + 1, :] = norm_mask_s(s_ref[0], mat_ref[0])
        pads[TH + 2:TH + 4, 1:W + 1, :] = norm_mask_s(sb_ref[0], mb_ref[0]) * vb

        def conv3x3(rows, w_ref, bias):
            # 9-tap accumulation: no materialised (rows*W, 9C) im2col buffer.
            acc = jnp.zeros((rows * W, C), jnp.float32)
            for dy in range(3):
                for dx in range(3):
                    # TODO(synk): on v5e, pre-shift the dx=+/-1 windows with
                    # pltpu.roll if sublane-offset loads show up in profiles.
                    win = pads[dy:dy + rows, dx:dx + W, :]
                    win = win.reshape(rows * W, C).astype(jnp.bfloat16)
                    acc = acc + jnp.dot(win, w_ref[dy * 3 + dx],
                                        preferred_element_type=jnp.float32)
            return acc + bias

        # conv1 + ReLU over TH+2 rows (includes the 1-row halo needed by conv2).
        h1 = jnp.maximum(conv3x3(R1, w1_ref, b1), 0.0).reshape(R1, W, C)
        # h1 rows outside the image must be ZERO (conv2 zero-pads h1, it does
        # not see conv1 applied to padding), so kill the halo rows at edges.
        ridx = jax.lax.broadcasted_iota(jnp.int32, (R1, 1, 1), 0)
        rv = jnp.where(ridx == 0, vt, 1.0) * jnp.where(ridx == R1 - 1, vb, 1.0)
        pads[0:R1, 1:W + 1, :] = h1 * rv

        new_fea = conv3x3(TH, w2_ref, b2)                       # (TH*W, C)

        # Normalised dropout(T) for this row tile.
        t = t_ref[0] * (keep_ref[0].astype(jnp.float32) * inv_keep)
        t_n = (t - t_mu) * t_sc
        diff = new_fea - t_n.reshape(TH * W, C)
        loss_ref[...] = jnp.full((1, 1, 128), jnp.sum(diff * diff), jnp.float32)

    return kernel


def fused_mgd(s, t, keep_i8, mat_i8, stats8, w1p, w2p, inv_keep):
    N, H, W, C = s.shape
    cap = _vmem_cap()
    TH = _pick_row_tile(H, W, C, cap)
    T = H // TH
    half = TH // 2
    hblk_last = max(H // 2 - 1, 0)

    def cmap(n, j):
        return (n, j, 0, 0)

    def top_map(n, j):                        # rows [j*TH-2, j*TH)
        return (n, jnp.maximum(j * half - 1, 0), 0, 0)

    def bot_map(n, j):                        # rows [(j+1)*TH, (j+1)*TH+2)
        return (n, jnp.minimum((j + 1) * half, hblk_last), 0, 0)

    return pl.pallas_call(
        _make_fused_kernel(TH, W, C, inv_keep),
        out_shape=jax.ShapeDtypeStruct((N * T, 1, 128), jnp.float32),
        grid_spec=pltpu.PrefetchScalarGridSpec(
            num_scalar_prefetch=0,
            grid=(N, T),
            in_specs=[
                pl.BlockSpec((1, TH, W, C), cmap),      # S centre tile
                pl.BlockSpec((1, 2, W, C), top_map),    # S top halo
                pl.BlockSpec((1, 2, W, C), bot_map),    # S bottom halo
                pl.BlockSpec((1, TH, W, C), cmap),      # T centre tile
                pl.BlockSpec((1, TH, W, C), cmap),      # dropout keep (int8)
                pl.BlockSpec((1, TH, W, C), cmap),      # spatial mask (int8)
                pl.BlockSpec((1, 2, W, C), top_map),    # mask top halo
                pl.BlockSpec((1, 2, W, C), bot_map),    # mask bottom halo
                pl.BlockSpec((8, C), lambda n, j: (0, 0)),        # packed stats/biases
                pl.BlockSpec((9, C, C), lambda n, j: (0, 0, 0)),  # w1 bf16
                pl.BlockSpec((9, C, C), lambda n, j: (0, 0, 0)),  # w2 bf16
            ],
            out_specs=pl.BlockSpec((1, 1, 128), lambda n, j: (n * T + j, 0, 0)),
            scratch_shapes=[pltpu.VMEM((TH + 4, W + 2, C), jnp.float32)]),
        compiler_params=pltpu.CompilerParams(
            dimension_semantics=("parallel", "parallel"),
            vmem_limit_bytes=cap),
    )(s, s, s, t, keep_i8, mat_i8, mat_i8, mat_i8, stats8, w1p, w2p)


# ----------------------------------------------------------------------------
# Module-level forward (glue): per-feature-level loop, tiny XLA finalize.
# ----------------------------------------------------------------------------
def akd_mgd_loss_pallas(y_s_list, y_t_list, params, masks,
                        alpha_mgd=2e-5, drop_rate=0.1, channels_last=True):
    if not isinstance(y_s_list, (tuple, list)):
        y_s_list = (y_s_list,)
        y_t_list = (y_t_list,)
    assert len(y_s_list) == len(y_t_list) == len(params) == len(masks)

    inv_keep = float(1.0 / (1.0 - drop_rate))
    total = jnp.float32(0.0)
    for idx, (s, t) in enumerate(zip(y_s_list, y_t_list)):
        if not channels_last:
            # TODO(synk): prefer NHWC features upstream; this transpose is a
            # full HBM round trip of both feature maps.
            s = jnp.transpose(s, (0, 2, 3, 1))
            t = jnp.transpose(t, (0, 2, 3, 1))
        s = s.astype(jnp.float32)
        t = t.astype(jnp.float32)
        N, H, W, C = t.shape
        M = N * H * W

        keep_i8, mat_i8 = masks[idx]                   # {0,1} masks
        keep_i8 = keep_i8.astype(jnp.int8)
        mat_i8 = jnp.broadcast_to(mat_i8, (N, H, W, C)).astype(jnp.int8)
        w1, b1, w2, b2 = params[idx]                   # (9,C,C), (C,), (9,C,C), (C,)

        # 1) per-channel BN statistics (tiled, 2-TC-shardable reduction).
        raw = bn_stats(s.reshape(M, C), t.reshape(M, C),
                       keep_i8.reshape(M, C), inv_keep)
        stats = raw.reshape(-1, 8, C).sum(axis=0)
        inv_m = jnp.float32(1.0 / M)
        s_mu = stats[0] * inv_m
        s_var = jnp.maximum(stats[1] * inv_m - s_mu * s_mu, 0.0)
        t_mu = stats[2] * inv_m
        t_var = jnp.maximum(stats[3] * inv_m - t_mu * t_mu, 0.0)
        s_sc = jax.lax.rsqrt(s_var + _BN_EPS)
        t_sc = jax.lax.rsqrt(t_var + _BN_EPS)
        packed = jnp.stack(
            [s_mu, s_sc, t_mu, t_sc,
             jnp.asarray(b1, jnp.float32).reshape(C),
             jnp.asarray(b2, jnp.float32).reshape(C),
             jnp.zeros((C,), jnp.float32), jnp.zeros((C,), jnp.float32)], axis=0)

        # 2) fused normalise + mask + MaskModule + per-row-tile SSE.
        part = fused_mgd(s, t, keep_i8, mat_i8, packed,
                         w1.reshape(9, C, C).astype(jnp.bfloat16),
                         w2.reshape(9, C, C).astype(jnp.bfloat16), inv_keep)
        total = total + jnp.sum(part[:, 0, 0]) / N     # MSE(sum) / N

    return total * alpha_mgd


# ----------------------------------------------------------------------------
# Pure-JAX f32 reference (correctness check of the Pallas path), NHWC.
# ----------------------------------------------------------------------------
def reference_loss(s, t, keep_i8, mat_i8, w1, b1, w2, b2, alpha_mgd, drop_rate):
    s = s.astype(jnp.float32)
    t = t.astype(jnp.float32) * keep_i8.astype(jnp.float32) / (1.0 - drop_rate)

    def bn(x):
        m = x.shape[0] * x.shape[1] * x.shape[2]
        mean = jnp.sum(x, axis=(0, 1, 2), keepdims=True) / m
        var = jnp.sum(x * x, axis=(0, 1, 2), keepdims=True) / m - mean * mean
        return (x - mean) * jax.lax.rsqrt(var + _BN_EPS)

    C = s.shape[-1]
    mat = jnp.broadcast_to(mat_i8, s.shape).astype(jnp.float32)
    s_n = bn(s) * mat
    t_n = bn(t)
    dn = ('NHWC', 'HWIO', 'NHWC')
    h = jax.lax.conv_general_dilated(s_n, w1.reshape(3, 3, C, C), (1, 1),
                                     'SAME', dimension_numbers=dn)
    h = jax.nn.relu(h + b1.reshape(1, 1, 1, C))
    new = jax.lax.conv_general_dilated(h, w2.reshape(3, 3, C, C), (1, 1),
                                       'SAME', dimension_numbers=dn)
    new = new + b2.reshape(1, 1, 1, C)
    dis = jnp.sum((new - t_n) ** 2) / s.shape[0]
    return dis * alpha_mgd


if __name__ == "__main__":
    # Small shapes consistent with the module: Bs*C*H*W feature maps.
    N, C, H, W = 2, 8, 16, 16
    alpha_mgd, lambda_mgd, drop_rate = 2e-5, 0.65, 0.1

    key = jax.random.PRNGKey(0)
    k_s, k_t, k_w1, k_b1, k_w2, k_b2, k_drop, k_mat = jax.random.split(key, 8)

    # Channels-last features (no NCHW->NHWC HBM round trip).
    y_s = jax.random.normal(k_s, (N, H, W, C), jnp.float32)
    y_t = jax.random.normal(k_t, (N, H, W, C), jnp.float32)

    # MaskModule params (Conv2d(C, C, 3, padding=1) x2), deterministic init.
    fan_in = C * 9
    bound = 1.0 / math.sqrt(fan_in)
    w1 = jax.random.uniform(k_w1, (9, C, C), jnp.float32, -bound, bound)  # [ky*3+kx, ci, co]
    b1 = jax.random.uniform(k_b1, (C,), jnp.float32, -bound, bound)
    w2 = jax.random.uniform(k_w2, (9, C, C), jnp.float32, -bound, bound)
    b2 = jax.random.uniform(k_b2, (C,), jnp.float32, -bound, bound)

    # Forward-pass randomness (dropout keep-mask, spatial mask) generated
    # host-side as {0,1} int8 so the Pallas path and the reference agree.
    keep_i8 = jax.random.bernoulli(
        k_drop, 1.0 - drop_rate, (N, H, W, C)).astype(jnp.int8)
    u = jax.random.uniform(k_mat, (N, H, W, 1), jnp.float32)
    mat_i8 = (u <= (1.0 - lambda_mgd)).astype(jnp.int8)  # where(rand > 1-l, 0, 1)

    loss = akd_mgd_loss_pallas([y_s], [y_t],
                               params=[(w1, b1, w2, b2)],
                               masks=[(keep_i8, mat_i8)],
                               alpha_mgd=alpha_mgd, drop_rate=drop_rate)
    loss = jax.block_until_ready(loss)

    ref = jax.block_until_ready(
        reference_loss(y_s, y_t, keep_i8, mat_i8, w1, b1, w2, b2,
                       alpha_mgd, drop_rate))

    # bf16 matmul operands (f32 accumulate) vs f32 reference -> loose rtol.
    assert jnp.allclose(loss, ref, rtol=1e-2, atol=1e-7), (float(loss), float(ref))
    print("KERNEL_OK")
</pallas_src>

<mosaic_0001>
module attributes {stable_mosaic.version = 11 : i64} {
  func.func @kernel(%arg0: i32, %arg1: i32, %arg2: memref<256x8xf32, #tpu.memory_space<vmem>>, %arg3: memref<256x8xf32, #tpu.memory_space<vmem>>, %arg4: memref<256x8xi8, #tpu.memory_space<vmem>>, %arg5: memref<8x8xf32, #tpu.memory_space<vmem>>) attributes {dimension_semantics = [#tpu.dimension_semantics<parallel>, #tpu.dimension_semantics<arbitrary>], iteration_bounds = array<i64: 1, 2>, scalar_prefetch = 0 : i64, scratch_operands = 0 : i64, tpu.core_type = #tpu.core_type<tc>, window_params = [{transform_indices = @transform_0, window_bounds = array<i64: 256, 8>}, {transform_indices = @transform_1, window_bounds = array<i64: 256, 8>}, {transform_indices = @transform_2, window_bounds = array<i64: 256, 8>}, {transform_indices = @transform_3, window_bounds = array<i64: 8, 8>}]} {
    %c0_i32 = arith.constant 0 : i32
    %0 = arith.cmpi eq, %arg1, %c0_i32 : i32
    %1 = arith.extui %0 : i1 to i32
    %c0_i32_0 = arith.constant 0 : i32
    %2 = arith.cmpi ne, %1, %c0_i32_0 : i32
    scf.if %2 {
      %cst_23 = arith.constant 0.000000e+00 : f32
      %32 = vector.broadcast %cst_23 : f32 to vector<8x8xf32>
      %c0_24 = arith.constant 0 : index
      %c0_25 = arith.constant 0 : index
      %33 = vector.load %arg5[%c0_24, %c0_25] : memref<8x8xf32, #tpu.memory_space<vmem>>, vector<8x8xf32>
      tpu.vector_store %arg5[%c0_24, %c0_25], %32 {strides = array<i32>} : memref<8x8xf32, #tpu.memory_space<vmem>>, vector<8x8xf32>,
    } else {
    }
    %c0 = arith.constant 0 : index
    %c0_1 = arith.constant 0 : index
    %3 = vector.load %arg2[%c0, %c0_1] : memref<256x8xf32, #tpu.memory_space<vmem>>, vector<256x8xf32>
    %c0_2 = arith.constant 0 : index
    %c0_3 = arith.constant 0 : index
    %4 = vector.load %arg3[%c0_2, %c0_3] : memref<256x8xf32, #tpu.memory_space<vmem>>, vector<256x8xf32>
    %c0_4 = arith.constant 0 : index
    %c0_5 = arith.constant 0 : index
    %5 = vector.load %arg4[%c0_4, %c0_5] : memref<256x8xi8, #tpu.memory_space<vmem>>, vector<256x8xi8>
    %6 = arith.sitofp %5 : vector<256x8xi8> to vector<256x8xf32>
    %cst = arith.constant 1.11111116 : f32
    %7 = vector.broadcast %cst : f32 to vector<256x8xf32>
    %8 = arith.mulf %6, %7 : vector<256x8xf32>
    %9 = arith.mulf %4, %8 : vector<256x8xf32>
    %c0_6 = arith.constant 0 : index
    %c0_7 = arith.constant 0 : index
    %10 = vector.load %arg5[%c0_6, %c0_7] : memref<8x8xf32, #tpu.memory_space<vmem>>, vector<1x8xf32>
    %cst_8 = arith.constant dense<0.000000e+00> : vector<8xf32>
    %11 = vector.multi_reduction <add>, %3, %cst_8 [0] : vector<256x8xf32> to vector<8xf32>
    %12 = vector.shape_cast %11 : vector<8xf32> to vector<1x8xf32>
    %13 = arith.addf %10, %12 : vector<1x8xf32>
    %c0_9 = arith.constant 0 : index
    %c0_10 = arith.constant 0 : index
    %14 = vector.load %arg5[%c0_9, %c0_10] : memref<8x8xf32, #tpu.memory_space<vmem>>, vector<1x8xf32>
    tpu.vector_store %arg5[%c0_9, %c0_10], %13 {strides = array<i32>} : memref<8x8xf32, #tpu.memory_space<vmem>>, vector<1x8xf32>,
    %c1 = arith.constant 1 : index
    %c0_11 = arith.constant 0 : index
    %15 = vector.load %arg5[%c1, %c0_11] : memref<8x8xf32, #tpu.memory_space<vmem>>, vector<1x8xf32>
    %16 = arith.mulf %3, %3 : vector<256x8xf32>
    %cst_12 = arith.constant dense<0.000000e+00> : vector<8xf32>
    %17 = vector.multi_reduction <add>, %16, %cst_12 [0] : vector<256x8xf32> to vector<8xf32>
    %18 = vector.shape_cast %17 : vector<8xf32> to vector<1x8xf32>
    %19 = arith.addf %15, %18 : vector<1x8xf32>
    %c1_13 = arith.constant 1 : index
    %c0_14 = arith.constant 0 : index
    %20 = vector.load %arg5[%c1_13, %c0_14] : memref<8x8xf32, #tpu.memory_space<vmem>>, vector<1x8xf32>
    tpu.vector_store %arg5[%c1_13, %c0_14], %19 {strides = array<i32>} : memref<8x8xf32, #tpu.memory_space<vmem>>, vector<1x8xf32>,
    %c2 = arith.constant 2 : index
    %c0_15 = arith.constant 0 : index
    %21 = vector.load %arg5[%c2, %c0_15] : memref<8x8xf32, #tpu.memory_space<vmem>>, vector<1x8xf32>
    %cst_16 = arith.constant dense<0.000000e+00> : vector<8xf32>
    %22 = vector.multi_reduction <add>, %9, %cst_16 [0] : vector<256x8xf32> to vector<8xf32>
    %23 = vector.shape_cast %22 : vector<8xf32> to vector<1x8xf32>
    %24 = arith.addf %21, %23 : vector<1x8xf32>
    %c2_17 = arith.constant 2 : index
    %c0_18 = arith.constant 0 : index
    %25 = vector.load %arg5[%c2_17, %c0_18] : memref<8x8xf32, #tpu.memory_space<vmem>>, vector<1x8xf32>
    tpu.vector_store %arg5[%c2_17, %c0_18], %24 {strides = array<i32>} : memref<8x8xf32, #tpu.memory_space<vmem>>, vector<1x8xf32>,
    %c3 = arith.constant 3 : index
    %c0_19 = arith.constant 0 : index
    %26 = vector.load %arg5[%c3, %c0_19] : memref<8x8xf32, #tpu.memory_space<vmem>>, vector<1x8xf32>
    %27 = arith.mulf %9, %9 : vector<256x8xf32>
    %cst_20 = arith.constant dense<0.000000e+00> : vector<8xf32>
    %28 = vector.multi_reduction <add>, %27, %cst_20 [0] : vector<256x8xf32> to vector<8xf32>
    %29 = vector.shape_cast %28 : vector<8xf32> to vector<1x8xf32>
    %30 = arith.addf %26, %29 : vector<1x8xf32>
    %c3_21 = arith.constant 3 : index
    %c0_22 = arith.constant 0 : index
    %31 = vector.load %arg5[%c3_21, %c0_22] : memref<8x8xf32, #tpu.memory_space<vmem>>, vector<1x8xf32>
    tpu.vector_store %arg5[%c3_21, %c0_22], %30 {strides = array<i32>} : memref<8x8xf32, #tpu.memory_space<vmem>>, vector<1x8xf32>,
    return
  }
  func.func @transform_0(%arg0: i32, %arg1: i32) -> (i32, i32) {
    %c2_i32 = arith.constant 2 : i32
    %0 = arith.muli %arg0, %c2_i32 : i32
    %1 = arith.addi %0, %arg1 : i32
    %c0_i32 = arith.constant 0 : i32
    %c0_i32_0 = arith.constant 0 : i32
    return %1, %c0_i32 : i32, i32
  }
  func.func @transform_1(%arg0: i32, %arg1: i32) -> (i32, i32) {
    %c2_i32 = arith.constant 2 : i32
    %0 = arith.muli %arg0, %c2_i32 : i32
    %1 = arith.addi %0, %arg1 : i32
    %c0_i32 = arith.constant 0 : i32
    %c0_i32_0 = arith.constant 0 : i32
    return %1, %c0_i32 : i32, i32
  }
  func.func @transform_2(%arg0: i32, %arg1: i32) -> (i32, i32) {
    %c2_i32 = arith.constant 2 : i32
    %0 = arith.muli %arg0, %c2_i32 : i32
    %1 = arith.addi %0, %arg1 : i32
    %c0_i32 = arith.constant 0 : i32
    %c0_i32_0 = arith.constant 0 : i32
    return %1, %c0_i32 : i32, i32
  }
  func.func @transform_3(%arg0: i32, %arg1: i32) -> (i32, i32) {
    %c0_i32 = arith.constant 0 : i32
    %c0_i32_0 = arith.constant 0 : i32
    return %arg0, %c0_i32 : i32, i32
  }
}

</mosaic_0001>

<llo_original>
// kernel: tpu_custom_call.1
$region0: #{tpu_custom_call.1}
  #allocation0 [shape = 'u32[]', space=smem, size = 0x4, offset = 0x4, fixed_abs, tag = 'smem constant byte address 0x4 - core index']
  #allocation1 [shape = 'u32[144,128]{1,0:T(1,128)}', space=vmem, size = 0x12000, scoped, tag = 'internal scratch']
  %s0 = inlined_call_operand.hbm [shape: f32[512,8], index: 0, kind: input, shape index: {}]
  %s1 = inlined_call_operand.hbm [shape: f32[512,8], index: 1, kind: input, shape index: {}]
  %s2 = inlined_call_operand.hbm [shape: s8[512,8], index: 2, kind: input, shape index: {}]
  %s3 = inlined_call_operand.hbm [shape: f32[8,8], index: 3, kind: output, shape index: {}]
  %s4 = sld [smem:[#allocation0]]
  $region61: #{tpu_custom_call.1} parent=0
    _
  %s6 = ssub.s32 1, %s4
  %s7 = scalar_select 0, %s6, %s4
  $region1: #{tpu_custom_call.1} parent=0
    #allocation2 [shape = 'u8[262144]{0}', space=vmem, size = 0x40000, scoped, tag = 'input window, operand 0']
    #allocation3 [shape = 's32[2]{0}', space=sflag, size = 0x8, scoped, tag = 'scoped memory for tpu_custom_call.1']
    #allocation4 [shape = 's32[2]{0}', space=sflag, size = 0x8, scoped, tag = 'scoped memory for tpu_custom_call.1']
    #allocation5 [shape = 'u8[262144]{0}', space=vmem, size = 0x40000, scoped, tag = 'input window, operand 1']
    #allocation6 [shape = 's32[2]{0}', space=sflag, size = 0x8, scoped, tag = 'scoped memory for tpu_custom_call.1']
    #allocation7 [shape = 'u8[65536]{0}', space=vmem, size = 0x10000, scoped, tag = 'input window, operand 2']
    #allocation8 [shape = 'u8[4096]{0}', space=vmem, size = 0x1000, scoped, tag = 'output window, operand 0, single buffered']
    %8 = vsyncpa [#allocation3], 0
    %s9 = scalar_lea.sflag [#allocation3], 1
    %10 = vsyncpa %s9, 0
    %11 = vsyncpa [#allocation6], 0
    %s12 = scalar_lea.sflag [#allocation6], 1
    %13 = vsyncpa %s12, 0
    %14 = vsyncpa [#allocation4], 0
    loop: start=0, step=1, limit=4
    $region2: #{tpu_custom_call.1} parent=1 // loop_pre_header
      _
    $region3: #{tpu_custom_call.1} parent=1 // loop_header
      %s16 = sphi 0, %s20
      %p17 = scmp.ge.s32.totalorder %s16, 4
      %s23 = sphi 0, %s35
      %s24 = sphi 0, %s31
      %s25 = sphi 0, %s23
      %s26 = sphi 0, %s24
      %s27 = sphi 0, %s25
      %s28 = sphi 0, %s26
      %s42 = sphi 0, %s44
      %s45 = sphi 0, %s42
      %s46 = sphi 0, %s45
      %s62 = sphi 0, %s46
      %s72 = sphi 0, %s74
      %s75 = sphi 0, %s72
      %s76 = sphi 0, %s75
      %s92 = sphi 0, %s76
      %s102 = sphi 0, %s104
      %s105 = sphi 0, %s102
      %s106 = sphi 0, %s105
      %s122 = sphi 0, %s106
      %s128 = sphi 0, %s130
      %s131 = sphi 0, %s128
      %s132 = sphi 0, %s131
      %s148 = sphi 0, %s132
    $region4: #{tpu_custom_call.1} parent=1 // loop_header_branch
      %19 = sbr.rel (%p17) target = $region8
    $region5: #{tpu_custom_call.1} parent=1 // loop_body
      %s21 = ssub.s32 %s16, 1
      %s22 = ssub.s32 %s16, 2
      %s29 = sadd.s32 1, %s24
      %p30 = scmp.ge.s32.totalorder %s29, 2
      %s31 = scalar_select %p30, 0, %s29
      %s32 = sadd.s32 1, %s23
      %s33 = scalar_select %p30, %s32, %s23
      %p34 = scmp.ge.s32.totalorder %s33, 1
      %s35 = scalar_select %p34, 0, %s33
      %s36 = smul.u32 %s23, 2
      %s37 = sadd.s32 %s36, %s24
      %s38 = smul.u32 %s35, 2
      %s39 = sadd.s32 %s38, %s31
      %s40 = ssub.s32 %s37, %s39
      %p41 = scmp.eq.s32.totalorder %s40, 0
      %s43 = sadd.s32 %s42, 1
      %s44 = scalar_select %p41, %s42, %s43
      %p47 = pneg %p41
      %p48 = scmp.eq.s32.totalorder %s16, 1
      %p49 = por %p47, %p48
      %p50 = scmp.ne.s32.totalorder %s42, %s45
      %p51 = scmp.eq.s32.totalorder %s16, 0
      %p52 = por %p50, %p51
      %p53 = scmp.ne.s32.totalorder %s42, %s45
      %p54 = scmp.eq.s32.totalorder %s21, 1
      %p55 = por %p53, %p54
      %p56 = scmp.ne.s32.totalorder %s45, %s46
      %p57 = scmp.eq.s32.totalorder %s21, 0
      %p58 = por %p56, %p57
      %p59 = scmp.ne.s32.totalorder %s45, %s46
      %p60 = scmp.eq.s32.totalorder %s22, 1
      %p61 = por %p59, %p60
      %p63 = scmp.ne.s32.totalorder %s46, %s62
      %p64 = scmp.eq.s32.totalorder %s22, 0
      %p65 = por %p63, %p64
      %s66 = smul.u32 %s23, 2
      %s67 = sadd.s32 %s66, %s24
      %s68 = smul.u32 %s35, 2
      %s69 = sadd.s32 %s68, %s31
      %s70 = ssub.s32 %s67, %s69
      %p71 = scmp.eq.s32.totalorder %s70, 0
      %s73 = sadd.s32 %s72, 1
      %s74 = scalar_select %p71, %s72, %s73
      %p77 = pneg %p71
      %p78 = scmp.eq.s32.totalorder %s16, 1
      %p79 = por %p77, %p78
      %p80 = scmp.ne.s32.totalorder %s72, %s75
      %p81 = scmp.eq.s32.totalorder %s16, 0
      %p82 = por %p80, %p81
      %p83 = scmp.ne.s32.totalorder %s72, %s75
      %p84 = scmp.eq.s32.totalorder %s21, 1
      %p85 = por %p83, %p84
      %p86 = scmp.ne.s32.totalorder %s75, %s76
      %p87 = scmp.eq.s32.totalorder %s21, 0
      %p88 = por %p86, %p87
      %p89 = scmp.ne.s32.totalorder %s75, %s76
      %p90 = scmp.eq.s32.totalorder %s22, 1
      %p91 = por %p89, %p90
      %p93 = scmp.ne.s32.totalorder %s76, %s92
      %p94 = scmp.eq.s32.totalorder %s22, 0
      %p95 = por %p93, %p94
      %s96 = smul.u32 %s23, 2
      %s97 = sadd.s32 %s96, %s24
      %s98 = smul.u32 %s35, 2
      %s99 = sadd.s32 %s98, %s31
      %s100 = ssub.s32 %s97, %s99
      %p101 = scmp.eq.s32.totalorder %s100, 0
      %s103 = sadd.s32 %s102, 1
      %s104 = scalar_select %p101, %s102, %s103
      %p107 = pneg %p101
      %p108 = scmp.eq.s32.totalorder %s16, 1
      %p109 = por %p107, %p108
      %p110 = scmp.ne.s32.totalorder %s102, %s105
      %p111 = scmp.eq.s32.totalorder %s16, 0
      %p112 = por %p110, %p111
      %p113 = scmp.ne.s32.totalorder %s102, %s105
      %p114 = scmp.eq.s32.totalorder %s21, 1
      %p115 = por %p113, %p114
      %p116 = scmp.ne.s32.totalorder %s105, %s106
      %p117 = scmp.eq.s32.totalorder %s21, 0
      %p118 = por %p116, %p117
      %p119 = scmp.ne.s32.totalorder %s105, %s106
      %p120 = scmp.eq.s32.totalorder %s22, 1
      %p121 = por %p119, %p120
      %p123 = scmp.ne.s32.totalorder %s106, %s122
      %p124 = scmp.eq.s32.totalorder %s22, 0
      %p125 = por %p123, %p124
      %s126 = ssub.s32 %s23, %s35
      %p127 = scmp.eq.s32.totalorder %s126, 0
      %s129 = sadd.s32 %s128, 1
      %s130 = scalar_select %p127, %s128, %s129
      %p133 = pneg %p127
      %p134 = scmp.eq.s32.totalorder %s16, 1
      %p135 = por %p133, %p134
      %p136 = scmp.ne.s32.totalorder %s128, %s131
      %p137 = scmp.eq.s32.totalorder %s16, 0
      %p138 = por %p136, %p137
      %p139 = scmp.ne.s32.totalorder %s128, %s131
      %p140 = scmp.eq.s32.totalorder %s21, 1
      %p141 = por %p139, %p140
      %p142 = scmp.ne.s32.totalorder %s131, %s132
      %p143 = scmp.eq.s32.totalorder %s21, 0
      %p144 = por %p142, %p143
      %p145 = scmp.ne.s32.totalorder %s131, %s132
      %p146 = scmp.eq.s32.totalorder %s22, 1
      %p147 = por %p145, %p146
      %p149 = scmp.ne.s32.totalorder %s132, %s148
      %p150 = scmp.eq.s32.totalorder %s22, 0
      %p151 = por %p149, %p150
      %p152 = scmp.le.s32.totalorder 1, %s16
      %p153 = scmp.lt.s32.totalorder %s16, 3
      %p154 = pnand %p152, %p153
      %p155 = pneg %p154
      // Predicated region
      $region9: #{tpu_custom_call.1} parent=5 // pred_check
        _
      $region10: #{tpu_custom_call.1} parent=5 // pred_check_branch
        %157 = sbr.rel (%p154) target = $region12
      $region11: #{tpu_custom_call.1} parent=5 // pred_region
        %s158 = ssub.s32 %s16, 1
      $region12: #{tpu_custom_call.1} parent=5 // pred_fallthru
        _
      %p159 = scmp.lt.s32.totalorder %s16, 2
      // Predicated region
      $region13: #{tpu_custom_call.1} parent=5 // pred_check
        %p160 = pneg %p159
      $region14: #{tpu_custom_call.1} parent=5 // pred_check_branch
        %162 = sbr.rel (%p160) target = $region16
      $region15: #{tpu_custom_call.1} parent=5 // pred_region
        // Predicated region
        $region17: #{tpu_custom_call.1} parent=15 // pred_check
          %p163 = pneg %p52
        $region18: #{tpu_custom_call.1} parent=15 // pred_check_branch
          %165 = sbr.rel (%p163) target = $region20
        $region19: #{tpu_custom_call.1} parent=15 // pred_region
          %s166 = sand.u32 %s42, 1
          %s167 = scalar_lea.sflag [#allocation3], %s166
          %s168 = sand.u32 %s42, 1
          %s169 = smul.addr %s168, 256
          %s170 = scalar_lea.vmem [#allocation2], %s169
          %s171 = smul.u32 %s23, 2
          %s172 = sadd.s32 %s171, %s24
          %s173 = smul.u32 32, %s172
          %s175 = ssub.s32 4096, 4096
          %176 = vsyncadd %s167, %s175
          %s177 = smul.addr %s173, 128
          %s178 = scalar_lea.hbm %s0, %s177
          %s179 = sshll.u32 %s170, 4
          %s180 = int_to_ptr.vmem [resolvable:$true] %s179
          %185 = dma.hbm_to_vmem [thread:$0]  %s178, 4096, %s180, %s167, 128, 128, 8
        $region20: #{tpu_custom_call.1} parent=15 // pred_fallthru
          _
        // Predicated region
        $region21: #{tpu_custom_call.1} parent=15 // pred_check
          %p186 = pneg %p82
        $region22: #{tpu_custom_call.1} parent=15 // pred_check_branch
          %188 = sbr.rel (%p186) target = $region24
        $region23: #{tpu_custom_call.1} parent=15 // pred_region
          %s189 = sand.u32 %s16, 1
          %s190 = scalar_lea.sflag [#allocation6], %s189
          %s191 = sand.u32 %s72, 1
          %s192 = smul.addr %s191, 256
          %s193 = scalar_lea.vmem [#allocation5], %s192
          %s194 = smul.u32 %s23, 2
          %s195 = sadd.s32 %s194, %s24
          %s196 = smul.u32 32, %s195
          %s198 = ssub.s32 4096, 4096
          %199 = vsyncadd %s190, %s198
          %s200 = smul.addr %s196, 128
          %s201 = scalar_lea.hbm %s1, %s200
          %s202 = sshll.u32 %s193, 4
          %s203 = int_to_ptr.vmem [resolvable:$true] %s202
          %208 = dma.hbm_to_vmem [thread:$0]  %s201, 4096, %s203, %s190, 128, 128, 8
        $region24: #{tpu_custom_call.1} parent=15 // pred_fallthru
          _
        // Predicated region
        $region25: #{tpu_custom_call.1} parent=15 // pred_check
          %p209 = pneg %p112
        $region26: #{tpu_custom_call.1} parent=15 // pred_check_branch
          %211 = sbr.rel (%p209) target = $region28
        $region27: #{tpu_custom_call.1} parent=15 // pred_region
          %s212 = sand.u32 %s16, 1
          %s213 = scalar_lea.sflag [#allocation6], %s212
          %s214 = sand.u32 %s102, 1
          %s215 = smul.addr %s214, 64
          %s216 = scalar_lea.vmem [#allocation7], %s215
          %s217 = smul.u32 %s23, 2
          %s218 = sadd.s32 %s217, %s24
          %s219 = smul.u32 32, %s218
          %s221 = ssub.s32 1024, 1024
          %222 = vsyncadd %s213, %s221
          %s223 = smul.addr %s219, 32
          %s224 = scalar_lea.hbm %s2, %s223
          %s225 = sshll.u32 %s216, 4
          %s226 = int_to_ptr.vmem [resolvable:$true] %s225
          %231 = dma.hbm_to_vmem [thread:$0]  %s224, 1024, %s226, %s213, 32, 32, 2
        $region28: #{tpu_custom_call.1} parent=15 // pred_fallthru
          _
      $region16: #{tpu_custom_call.1} parent=5 // pred_fallthru
        _
      %p232 = scmp.le.s32.totalorder 1, %s16
      %p233 = scmp.lt.s32.totalorder %s16, 3
      %p234 = pnand %p232, %p233
      %p235 = pneg %p234
      // Predicated region
      $region29: #{tpu_custom_call.1} parent=5 // pred_check
        _
      $region30: #{tpu_custom_call.1} parent=5 // pred_check_branch
        %237 = sbr.rel (%p234) target = $region32
      $region31: #{tpu_custom_call.1} parent=5 // pred_region
        %s238 = ssub.s32 %s16, 1
        %s239 = sand.u32 %s45, 1
        %s240 = scalar_lea.sflag [#allocation3], %s239
        %s241 = sand.u32 %s45, 1
        %s242 = smul.addr %s241, 256
        %s243 = scalar_lea.vmem [#allocation2], %s242
        // Predicated region
        $region33: #{tpu_custom_call.1} parent=31 // pred_check
          %p244 = pneg %p58
        $region34: #{tpu_custom_call.1} parent=31 // pred_check_branch
          %246 = sbr.rel (%p244) target = $region36
        $region35: #{tpu_custom_call.1} parent=31 // pred_region
          %247 = dma.done %s240, 4096
        $region36: #{tpu_custom_call.1} parent=31 // pred_fallthru
          _
        %s248 = sand.u32 %s21, 1
        %s249 = scalar_lea.sflag [#allocation6], %s248
        %s250 = sand.u32 %s75, 1
        %s251 = smul.addr %s250, 256
        %s252 = scalar_lea.vmem [#allocation5], %s251
        // Predicated region
        $region37: #{tpu_custom_call.1} parent=31 // pred_check
          %p253 = pneg %p88
        $region38: #{tpu_custom_call.1} parent=31 // pred_check_branch
          %255 = sbr.rel (%p253) target = $region40
        $region39: #{tpu_custom_call.1} parent=31 // pred_region
          %256 = dma.done %s249, 4096
        $region40: #{tpu_custom_call.1} parent=31 // pred_fallthru
          _
        %s257 = sand.u32 %s21, 1
        %s258 = scalar_lea.sflag [#allocation6], %s257
        %s259 = sand.u32 %s105, 1
        %s260 = smul.addr %s259, 64
        %s261 = scalar_lea.vmem [#allocation7], %s260
        // Predicated region
        $region41: #{tpu_custom_call.1} parent=31 // pred_check
          %p262 = pneg %p118
        $region42: #{tpu_custom_call.1} parent=31 // pred_check_branch
          %264 = sbr.rel (%p262) target = $region44
        $region43: #{tpu_custom_call.1} parent=31 // pred_region
          %265 = dma.done %s258, 1024
        $region44: #{tpu_custom_call.1} parent=31 // pred_fallthru
          _
        %s266 = sand.u32 %s45, 1
        %s267 = scalar_lea.sflag [#allocation3], %s266
        %s268 = sand.u32 %s45, 1
        %s269 = smul.addr %s268, 256
        %s270 = scalar_lea.vmem [#allocation2], %s269
        %p271 = pneg %p58
        %p272 = pneg %p55
        %s273 = sand.u32 %s21, 1
        %s274 = scalar_lea.sflag [#allocation6], %s273
        %s275 = sand.u32 %s75, 1
        %s276 = smul.addr %s275, 256
        %s277 = scalar_lea.vmem [#allocation5], %s276
        %p278 = pneg %p88
        %p279 = pneg %p85
        %s280 = sand.u32 %s21, 1
        %s281 = scalar_lea.sflag [#allocation6], %s280
        %s282 = sand.u32 %s105, 1
        %s283 = smul.addr %s282, 64
        %s284 = scalar_lea.vmem [#allocation7], %s283
        %p285 = pneg %p118
        %p286 = pneg %p115
        %p287 = pneg %p144
        %p288 = pneg %p141
        %s289 = smul.u32 %s25, 2
        %s290 = sadd.s32 %s289, %s26
        %s291 = smul.u32 32, %s290
        %s292 = smul.u32 %s25, 2
        %s293 = sadd.s32 %s292, %s26
        %s294 = smul.u32 32, %s293
        %s295 = smul.u32 %s25, 2
        %s296 = sadd.s32 %s295, %s26
        %s297 = smul.u32 32, %s296
        %p298 = scmp.eq.s32.totalorder %s26, 0
        // Predicated region
        $region45: #{tpu_custom_call.1} parent=31 // pred_check
          %p299 = pneg %p298
        $region46: #{tpu_custom_call.1} parent=31 // pred_check_branch
          %301 = sbr.rel (%p299) target = $region48
        $region47: #{tpu_custom_call.1} parent=31 // pred_region
          %vm302 = vcmask 64512
          %303 = vst.msk [vmem:[#allocation8] sm:$0xff] %vm302, 0.0
        $region48: #{tpu_custom_call.1} parent=31 // pred_fallthru
          _
        %v304 = vld [vmem:[%s243] sm:$0xff]
        %v305 = vld [vmem:[%s243 + $0x8] sm:$0xff]
        %v306 = vld [vmem:[%s243 + $0x10] sm:$0xff]
        %v307 = vld [vmem:[%s243 + $0x18] sm:$0xff]
        %v308 = vld [vmem:[%s243 + $0x20] sm:$0xff]
        %v309 = vld [vmem:[%s243 + $0x28] sm:$0xff]
        %v310 = vld [vmem:[%s243 + $0x30] sm:$0xff]
        %v311 = vld [vmem:[%s243 + $0x38] sm:$0xff]
        %v312 = vld [vmem:[%s243 + $0x40] sm:$0xff]
        %v313 = vld [vmem:[%s243 + $0x48] sm:$0xff]
        %v314 = vld [vmem:[%s243 + $0x50] sm:$0xff]
        %v315 = vld [vmem:[%s243 + $0x58] sm:$0xff]
        %v316 = vld [vmem:[%s243 + $0x60] sm:$0xff]
        %v317 = vld [vmem:[%s243 + $0x68] sm:$0xff]
        %v318 = vld [vmem:[%s243 + $0x70] sm:$0xff]
        %v319 = vld [vmem:[%s243 + $0x78] sm:$0xff]
        %v320 = vld [vmem:[%s243 + $0x80] sm:$0xff]
        %v321 = vld [vmem:[%s243 + $0x88] sm:$0xff]
        %v322 = vld [vmem:[%s243 + $0x90] sm:$0xff]
        %v323 = vld [vmem:[%s243 + $0x98] sm:$0xff]
        %v324 = vld [vmem:[%s243 + $0xa0] sm:$0xff]
        %v325 = vld [vmem:[%s243 + $0xa8] sm:$0xff]
        %v326 = vld [vmem:[%s243 + $0xb0] sm:$0xff]
        %v327 = vld [vmem:[%s243 + $0xb8] sm:$0xff]
        %v328 = vld [vmem:[%s243 + $0xc0] sm:$0xff]
        %v329 = vld [vmem:[%s243 + $0xc8] sm:$0xff]
        %v330 = vld [vmem:[%s243 + $0xd0] sm:$0xff]
        %v331 = vld [vmem:[%s243 + $0xd8] sm:$0xff]
        %v332 = vld [vmem:[%s243 + $0xe0] sm:$0xff]
        %v333 = vld [vmem:[%s243 + $0xe8] sm:$0xff]
        %v334 = vld [vmem:[%s243 + $0xf0] sm:$0xff]
        %v335 = vld [vmem:[%s243 + $0xf8] sm:$0xff]
        %v336 = vld [vmem:[%s252] sm:$0xff]
        %v337 = vld [vmem:[%s252 + $0x8] sm:$0xff]
        %v338 = vld [vmem:[%s252 + $0x10] sm:$0xff]
        %v339 = vld [vmem:[%s252 + $0x18] sm:$0xff]
        %v340 = vld [vmem:[%s252 + $0x20] sm:$0xff]
        %v341 = vld [vmem:[%s252 + $0x28] sm:$0xff]
        %v342 = vld [vmem:[%s252 + $0x30] sm:$0xff]
        %v343 = vld [vmem:[%s252 + $0x38] sm:$0xff]
        %v344 = vld [vmem:[%s252 + $0x40] sm:$0xff]
        %v345 = vld [vmem:[%s252 + $0x48] sm:$0xff]
        %v346 = vld [vmem:[%s252 + $0x50] sm:$0xff]
        %v347 = vld [vmem:[%s252 + $0x58] sm:$0xff]
        %v348 = vld [vmem:[%s252 + $0x60] sm:$0xff]
        %v349 = vld [vmem:[%s252 + $0x68] sm:$0xff]
        %v350 = vld [vmem:[%s252 + $0x70] sm:$0xff]
        %v351 = vld [vmem:[%s252 + $0x78] sm:$0xff]
        %v352 = vld [vmem:[%s252 + $0x80] sm:$0xff]
        %v353 = vld [vmem:[%s252 + $0x88] sm:$0xff]
        %v354 = vld [vmem:[%s252 + $0x90] sm:$0xff]
        %v355 = vld [vmem:[%s252 + $0x98] sm:$0xff]
        %v356 = vld [vmem:[%s252 + $0xa0] sm:$0xff]
        %v357 = vld [vmem:[%s252 + $0xa8] sm:$0xff]
        %v358 = vld [vmem:[%s252 + $0xb0] sm:$0xff]
        %v359 = vld [vmem:[%s252 + $0xb8] sm:$0xff]
        %v360 = vld [vmem:[%s252 + $0xc0] sm:$0xff]
        %v361 = vld [vmem:[%s252 + $0xc8] sm:$0xff]
        %v362 = vld [vmem:[%s252 + $0xd0] sm:$0xff]
        %v363 = vld [vmem:[%s252 + $0xd8] sm:$0xff]
        %v364 = vld [vmem:[%s252 + $0xe0] sm:$0xff]
        %v365 = vld [vmem:[%s252 + $0xe8] sm:$0xff]
        %v366 = vld [vmem:[%s252 + $0xf0] sm:$0xff]
        %v367 = vld [vmem:[%s252 + $0xf8] sm:$0xff]
        %v368 = vld [vmem:[%s261] sm:$0x3]
        %v369 = vld [vmem:[%s261 + $0x2] sm:$0x3]
        %v370 = vld [vmem:[%s261 + $0x4] sm:$0x3]
        %v371 = vld [vmem:[%s261 + $0x6] sm:$0x3]
        %v372 = vld [vmem:[%s261 + $0x8] sm:$0x3]
        %v373 = vld [vmem:[%s261 + $0xa] sm:$0x3]
        %v374 = vld [vmem:[%s261 + $0xc] sm:$0x3]
        %v375 = vld [vmem:[%s261 + $0xe] sm:$0x3]
        %v376 = vld [vmem:[%s261 + $0x10] sm:$0x3]
        %v377 = vld [vmem:[%s261 + $0x12] sm:$0x3]
        %v378 = vld [vmem:[%s261 + $0x14] sm:$0x3]
        %v379 = vld [vmem:[%s261 + $0x16] sm:$0x3]
        %v380 = vld [vmem:[%s261 + $0x18] sm:$0x3]
        %v381 = vld [vmem:[%s261 + $0x1a] sm:$0x3]
        %v382 = vld [vmem:[%s261 + $0x1c] sm:$0x3]
        %v383 = vld [vmem:[%s261 + $0x1e] sm:$0x3]
        %v384 = vld [vmem:[%s261 + $0x20] sm:$0x3]
        %v385 = vld [vmem:[%s261 + $0x22] sm:$0x3]
        %v386 = vld [vmem:[%s261 + $0x24] sm:$0x3]
        %v387 = vld [vmem:[%s261 + $0x26] sm:$0x3]
        %v388 = vld [vmem:[%s261 + $0x28] sm:$0x3]
        %v389 = vld [vmem:[%s261 + $0x2a] sm:$0x3]
        %v390 = vld [vmem:[%s261 + $0x2c] sm:$0x3]
        %v391 = vld [vmem:[%s261 + $0x2e] sm:$0x3]
        %v392 = vld [vmem:[%s261 + $0x30] sm:$0x3]
        %v393 = vld [vmem:[%s261 + $0x32] sm:$0x3]
        %v394 = vld [vmem:[%s261 + $0x34] sm:$0x3]
        %v395 = vld [vmem:[%s261 + $0x36] sm:$0x3]
        %v396 = vld [vmem:[%s261 + $0x38] sm:$0x3]
        %v397 = vld [vmem:[%s261 + $0x3a] sm:$0x3]
        %v398 = vld [vmem:[%s261 + $0x3c] sm:$0x3]
        %v399 = vld [vmem:[%s261 + $0x3e] sm:$0x3]
        %v400 = vunpack.c.0.s8 %v368
        %v401 = vunpack.c.0.s8 %v369
        %v402 = vunpack.c.0.s8 %v370
        %v403 = vunpack.c.0.s8 %v371
        %v404 = vunpack.c.0.s8 %v372
        %v405 = vunpack.c.0.s8 %v373
        %v406 = vunpack.c.0.s8 %v374
        %v407 = vunpack.c.0.s8 %v375
        %v408 = vunpack.c.0.s8 %v376
        %v409 = vunpack.c.0.s8 %v377
        %v410 = vunpack.c.0.s8 %v378
        %v411 = vunpack.c.0.s8 %v379
        %v412 = vunpack.c.0.s8 %v380
        %v413 = vunpack.c.0.s8 %v381
        %v414 = vunpack.c.0.s8 %v382
        %v415 = vunpack.c.0.s8 %v383
        %v416 = vunpack.c.0.s8 %v384
        %v417 = vunpack.c.0.s8 %v385
        %v418 = vunpack.c.0.s8 %v386
        %v419 = vunpack.c.0.s8 %v387
        %v420 = vunpack.c.0.s8 %v388
        %v421 = vunpack.c.0.s8 %v389
        %v422 = vunpack.c.0.s8 %v390
        %v423 = vunpack.c.0.s8 %v391
        %v424 = vunpack.c.0.s8 %v392
        %v425 = vunpack.c.0.s8 %v393
        %v426 = vunpack.c.0.s8 %v394
        %v427 = vunpack.c.0.s8 %v395
        %v428 = vunpack.c.0.s8 %v396
        %v429 = vunpack.c.0.s8 %v397
        %v430 = vunpack.c.0.s8 %v398
        %v431 = vunpack.c.0.s8 %v399
        %v432 = vcvt.s32.f32 %v400
        %v433 = vcvt.s32.f32 %v401
        %v434 = vcvt.s32.f32 %v402
        %v435 = vcvt.s32.f32 %v403
        %v436 = vcvt.s32.f32 %v404
        %v437 = vcvt.s32.f32 %v405
        %v438 = vcvt.s32.f32 %v406
        %v439 = vcvt.s32.f32 %v407
        %v440 = vcvt.s32.f32 %v408
        %v441 = vcvt.s32.f32 %v409
        %v442 = vcvt.s32.f32 %v410
        %v443 = vcvt.s32.f32 %v411
        %v444 = vcvt.s32.f32 %v412
        %v445 = vcvt.s32.f32 %v413
        %v446 = vcvt.s32.f32 %v414
        %v447 = vcvt.s32.f32 %v415
        %v448 = vcvt.s32.f32 %v416
        %v449 = vcvt.s32.f32 %v417
        %v450 = vcvt.s32.f32 %v418
        %v451 = vcvt.s32.f32 %v419
        %v452 = vcvt.s32.f32 %v420
        %v453 = vcvt.s32.f32 %v421
        %v454 = vcvt.s32.f32 %v422
        %v455 = vcvt.s32.f32 %v423
        %v456 = vcvt.s32.f32 %v424
        %v457 = vcvt.s32.f32 %v425
        %v458 = vcvt.s32.f32 %v426
        %v459 = vcvt.s32.f32 %v427
        %v460 = vcvt.s32.f32 %v428
        %v461 = vcvt.s32.f32 %v429
        %v462 = vcvt.s32.f32 %v430
        %v463 = vcvt.s32.f32 %v431
        %v464 = vmul.f32 %v432, 1.1111112
        %v465 = vmul.f32 %v433, 1.1111112
        %v466 = vmul.f32 %v434, 1.1111112
        %v467 = vmul.f32 %v435, 1.1111112
        %v468 = vmul.f32 %v436, 1.1111112
        %v469 = vmul.f32 %v437, 1.1111112
        %v470 = vmul.f32 %v438, 1.1111112
        %v471 = vmul.f32 %v439, 1.1111112
        %v472 = vmul.f32 %v440, 1.1111112
        %v473 = vmul.f32 %v441, 1.1111112
        %v474 = vmul.f32 %v442, 1.1111112
        %v475 = vmul.f32 %v443, 1.1111112
        %v476 = vmul.f32 %v444, 1.1111112
        %v477 = vmul.f32 %v445, 1.1111112
        %v478 = vmul.f32 %v446, 1.1111112
        %v479 = vmul.f32 %v447, 1.1111112
        %v480 = vmul.f32 %v448, 1.1111112
        %v481 = vmul.f32 %v449, 1.1111112
        %v482 = vmul.f32 %v450, 1.1111112
        %v483 = vmul.f32 %v451, 1.1111112
        %v484 = vmul.f32 %v452, 1.1111112
        %v485 = vmul.f32 %v453, 1.1111112
        %v486 = vmul.f32 %v454, 1.1111112
        %v487 = vmul.f32 %v455, 1.1111112
        %v488 = vmul.f32 %v456, 1.1111112
        %v489 = vmul.f32 %v457, 1.1111112
        %v490 = vmul.f32 %v458, 1.1111112
        %v491 = vmul.f32 %v459, 1.1111112
        %v492 = vmul.f32 %v460, 1.1111112
        %v493 = vmul.f32 %v461, 1.1111112
        %v494 = vmul.f32 %v462, 1.1111112
        %v495 = vmul.f32 %v463, 1.1111112
        %v496 = vmul.f32 %v336, %v464
        %v497 = vmul.f32 %v337, %v465
        %v498 = vmul.f32 %v338, %v466
        %v499 = vmul.f32 %v339, %v467
        %v500 = vmul.f32 %v340, %v468
        %v501 = vmul.f32 %v341, %v469
        %v502 = vmul.f32 %v342, %v470
        %v503 = vmul.f32 %v343, %v471
        %v504 = vmul.f32 %v344, %v472
        %v505 = vmul.f32 %v345, %v473
        %v506 = vmul.f32 %v346, %v474
        %v507 = vmul.f32 %v347, %v475
        %v508 = vmul.f32 %v348, %v476
        %v509 = vmul.f32 %v349, %v477
        %v510 = vmul.f32 %v350, %v478
        %v511 = vmul.f32 %v351, %v479
        %v512 = vmul.f32 %v352, %v480
        %v513 = vmul.f32 %v353, %v481
        %v514 = vmul.f32 %v354, %v482
        %v515 = vmul.f32 %v355, %v483
        %v516 = vmul.f32 %v356, %v484
        %v517 = vmul.f32 %v357, %v485
        %v518 = vmul.f32 %v358, %v486
        %v519 = vmul.f32 %v359, %v487
        %v520 = vmul.f32 %v360, %v488
        %v521 = vmul.f32 %v361, %v489
        %v522 = vmul.f32 %v362, %v490
        %v523 = vmul.f32 %v363, %v491
        %v524 = vmul.f32 %v364, %v492
        %v525 = vmul.f32 %v365, %v493
        %v526 = vmul.f32 %v366, %v494
        %v527 = vmul.f32 %v367, %v495
        %v528 = vld [vmem:[#allocation8] sm:$0x1]
        %vm529 = vcmask 64512
        %v530 = vsel %vm529, %v304, 0.0
        %v531 = vsel %vm529, %v305, 0.0
        %v532 = vadd.f32 %v530, %v531
        %v533 = vsel %vm529, %v306, 0.0
        %v534 = vadd.f32 %v532, %v533
        %v535 = vsel %vm529, %v307, 0.0
        %v536 = vadd.f32 %v534, %v535
        %v537 = vsel %vm529, %v308, 0.0
        %v538 = vadd.f32 %v536, %v537
        %v539 = vsel %vm529, %v309, 0.0
        %v540 = vadd.f32 %v538, %v539
        %v541 = vsel %vm529, %v310, 0.0
        %v542 = vadd.f32 %v540, %v541
        %v543 = vsel %vm529, %v311, 0.0
        %v544 = vadd.f32 %v542, %v543
        %v545 = vsel %vm529, %v312, 0.0
        %v546 = vadd.f32 %v544, %v545
        %v547 = vsel %vm529, %v313, 0.0
        %v548 = vadd.f32 %v546, %v547
        %v549 = vsel %vm529, %v314, 0.0
        %v550 = vadd.f32 %v548, %v549
        %v551 = vsel %vm529, %v315, 0.0
        %v552 = vadd.f32 %v550, %v551
        %v553 = vsel %vm529, %v316, 0.0
        %v554 = vadd.f32 %v552, %v553
        %v555 = vsel %vm529, %v317, 0.0
        %v556 = vadd.f32 %v554, %v555
        %v557 = vsel %vm529, %v318, 0.0
        %v558 = vadd.f32 %v556, %v557
        %v559 = vsel %vm529, %v319, 0.0
        %v560 = vadd.f32 %v558, %v559
        %v561 = vsel %vm529, %v320, 0.0
        %v562 = vadd.f32 %v560, %v561
        %v563 = vsel %vm529, %v321, 0.0
        %v564 = vadd.f32 %v562, %v563
        %v565 = vsel %vm529, %v322, 0.0
        %v566 = vadd.f32 %v564, %v565
        %v567 = vsel %vm529, %v323, 0.0
        %v568 = vadd.f32 %v566, %v567
        %v569 = vsel %vm529, %v324, 0.0
        %v570 = vadd.f32 %v568, %v569
        %v571 = vsel %vm529, %v325, 0.0
        %v572 = vadd.f32 %v570, %v571
        %v573 = vsel %vm529, %v326, 0.0
        %v574 = vadd.f32 %v572, %v573
        %v575 = vsel %vm529, %v327, 0.0
        %v576 = vadd.f32 %v574, %v575
        %v577 = vsel %vm529, %v328, 0.0
        %v578 = vadd.f32 %v576, %v577
        %v579 = vsel %vm529, %v329, 0.0
        %v580 = vadd.f32 %v578, %v579
        %v581 = vsel %vm529, %v330, 0.0
        %v582 = vadd.f32 %v580, %v581
        %v583 = vsel %vm529, %v331, 0.0
        %v584 = vadd.f32 %v582, %v583
        %v585 = vsel %vm529, %v332, 0.0
        %v586 = vadd.f32 %v584, %v585
        %v587 = vsel %vm529, %v333, 0.0
        %v588 = vadd.f32 %v586, %v587
        %v589 = vsel %vm529, %v334, 0.0
        %v590 = vadd.f32 %v588, %v589
        %v591 = vsel %vm529, %v335, 0.0
        %v592 = vadd.f32 %v590, %v591
        %v593 = vrot.slane %v592, 4
        %v594 = vadd.f32 %v592, %v593
        %v595 = vrot.slane %v594, 2
        %v596 = vadd.f32 %v594, %v595
        %v597 = vrot.slane %v596, 1
        %v598 = vadd.f32 %v596, %v597
        %v599 = vadd.f32 %v528, %v598
        %vm600 = vcmask 57344
        %601 = vst.msk [vmem:[#allocation8] sm:$0x1] %vm600, %v599
        %v602 = vld [vmem:[#allocation8 + $0x1] sm:$0x1]
        %v603 = vmul.f32 %v304, %v304
        %v604 = vmul.f32 %v305, %v305
        %v605 = vmul.f32 %v306, %v306
        %v606 = vmul.f32 %v307, %v307
        %v607 = vmul.f32 %v308, %v308
        %v608 = vmul.f32 %v309, %v309
        %v609 = vmul.f32 %v310, %v310
        %v610 = vmul.f32 %v311, %v311
        %v611 = vmul.f32 %v312, %v312
        %v612 = vmul.f32 %v313, %v313
        %v613 = vmul.f32 %v314, %v314
        %v614 = vmul.f32 %v315, %v315
        %v615 = vmul.f32 %v316, %v316
        %v616 = vmul.f32 %v317, %v317
        %v617 = vmul.f32 %v318, %v318
        %v618 = vmul.f32 %v319, %v319
        %v619 = vmul.f32 %v320, %v320
        %v620 = vmul.f32 %v321, %v321
        %v621 = vmul.f32 %v322, %v322
        %v622 = vmul.f32 %v323, %v323
        %v623 = vmul.f32 %v324, %v324
        %v624 = vmul.f32 %v325, %v325
        %v625 = vmul.f32 %v326, %v326
        %v626 = vmul.f32 %v327, %v327
        %v627 = vmul.f32 %v328, %v328
        %v628 = vmul.f32 %v329, %v329
        %v629 = vmul.f32 %v330, %v330
        %v630 = vmul.f32 %v331, %v331
        %v631 = vmul.f32 %v332, %v332
        %v632 = vmul.f32 %v333, %v333
        %v633 = vmul.f32 %v334, %v334
        %v634 = vmul.f32 %v335, %v335
        %v635 = vsel %vm529, %v603, 0.0
        %v636 = vsel %vm529, %v604, 0.0
        %v637 = vadd.f32 %v635, %v636
        %v638 = vsel %vm529, %v605, 0.0
        %v639 = vadd.f32 %v637, %v638
        %v640 = vsel %vm529, %v606, 0.0
        %v641 = vadd.f32 %v639, %v640
        %v642 = vsel %vm529, %v607, 0.0
        %v643 = vadd.f32 %v641, %v642
        %v644 = vsel %vm529, %v608, 0.0
        %v645 = vadd.f32 %v643, %v644
        %v646 = vsel %vm529, %v609, 0.0
        %v647 = vadd.f32 %v645, %v646
        %v648 = vsel %vm529, %v610, 0.0
        %v649 = vadd.f32 %v647, %v648
        %v650 = vsel %vm529, %v611, 0.0
        %v651 = vadd.f32 %v649, %v650
        %v652 = vsel %vm529, %v612, 0.0
        %v653 = vadd.f32 %v651, %v652
        %v654 = vsel %vm529, %v613, 0.0
        %v655 = vadd.f32 %v653, %v654
        %v656 = vsel %vm529, %v614, 0.0
        %v657 = vadd.f32 %v655, %v656
        %v658 = vsel %vm529, %v615, 0.0
        %v659 = vadd.f32 %v657, %v658
        %v660 = vsel %vm529, %v616, 0.0
        %v661 = vadd.f32 %v659, %v660
        %v662 = vsel %vm529, %v617, 0.0
        %v663 = vadd.f32 %v661, %v662
        %v664 = vsel %vm529, %v618, 0.0
        %v665 = vadd.f32 %v663, %v664
        %v666 = vsel %vm529, %v619, 0.0
        %v667 = vadd.f32 %v665, %v666
        %v668 = vsel %vm529, %v620, 0.0
        %v669 = vadd.f32 %v667, %v668
        %v670 = vsel %vm529, %v621, 0.0
        %v671 = vadd.f32 %v669, %v670
        %v672 = vsel %vm529, %v622, 0.0
        %v673 = vadd.f32 %v671, %v672
        %v674 = vsel %vm529, %v623, 0.0
        %v675 = vadd.f32 %v673, %v674
        %v676 = vsel %vm529, %v624, 0.0
        %v677 = vadd.f32 %v675, %v676
        %v678 = vsel %vm529, %v625, 0.0
        %v679 = vadd.f32 %v677, %v678
        %v680 = vsel %vm529, %v626, 0.0
        %v681 = vadd.f32 %v679, %v680
        %v682 = vsel %vm529, %v627, 0.0
        %v683 = vadd.f32 %v681, %v682
        %v684 = vsel %vm529, %v628, 0.0
        %v685 = vadd.f32 %v683, %v684
        %v686 = vsel %vm529, %v629, 0.0
        %v687 = vadd.f32 %v685, %v686
        %v688 = vsel %vm529, %v630, 0.0
        %v689 = vadd.f32 %v687, %v688
        %v690 = vsel %vm529, %v631, 0.0
        %v691 = vadd.f32 %v689, %v690
        %v692 = vsel %vm529, %v632, 0.0
        %v693 = vadd.f32 %v691, %v692
        %v694 = vsel %vm529, %v633, 0.0
        %v695 = vadd.f32 %v693, %v694
        %v696 = vsel %vm529, %v634, 0.0
        %v697 = vadd.f32 %v695, %v696
        %v698 = vrot.slane %v697, 4
        %v699 = vadd.f32 %v697, %v698
        %v700 = vrot.slane %v699, 2
        %v701 = vadd.f32 %v699, %v700
        %v702 = vrot.slane %v701, 1
        %v703 = vadd.f32 %v701, %v702
        %v704 = vadd.f32 %v602, %v703
        %705 = vst.msk [vmem:[#allocation8 + $0x1] sm:$0x1] %vm600, %v704
        %v706 = vld [vmem:[#allocation8 + $0x2] sm:$0x1]
        %v707 = vsel %vm529, %v496, 0.0
        %v708 = vsel %vm529, %v497, 0.0
        %v709 = vadd.f32 %v707, %v708
        %v710 = vsel %vm529, %v498, 0.0
        %v711 = vadd.f32 %v709, %v710
        %v712 = vsel %vm529, %v499, 0.0
        %v713 = vadd.f32 %v711, %v712
        %v714 = vsel %vm529, %v500, 0.0
        %v715 = vadd.f32 %v713, %v714
        %v716 = vsel %vm529, %v501, 0.0
        %v717 = vadd.f32 %v715, %v716
        %v718 = vsel %vm529, %v502, 0.0
        %v719 = vadd.f32 %v717, %v718
        %v720 = vsel %vm529, %v503, 0.0
        %v721 = vadd.f32 %v719, %v720
        %v722 = vsel %vm529, %v504, 0.0
        %v723 = vadd.f32 %v721, %v722
        %v724 = vsel %vm529, %v505, 0.0
        %v725 = vadd.f32 %v723, %v724
        %v726 = vsel %vm529, %v506, 0.0
        %v727 = vadd.f32 %v725, %v726
        %v728 = vsel %vm529, %v507, 0.0
        %v729 = vadd.f32 %v727, %v728
        %v730 = vsel %vm529, %v508, 0.0
        %v731 = vadd.f32 %v729, %v730
        %v732 = vsel %vm529, %v509, 0.0
        %v733 = vadd.f32 %v731, %v732
        %v734 = vsel %vm529, %v510, 0.0
        %v735 = vadd.f32 %v733, %v734
        %v736 = vsel %vm529, %v511, 0.0
        %v737 = vadd.f32 %v735, %v736
        %v738 = vsel %vm529, %v512, 0.0
        %v739 = vadd.f32 %v737, %v738
        %v740 = vsel %vm529, %v513, 0.0
        %v741 = vadd.f32 %v739, %v740
        %v742 = vsel %vm529, %v514, 0.0
        %v743 = vadd.f32 %v741, %v742
        %v744 = vsel %vm529, %v515, 0.0
        %v745 = vadd.f32 %v743, %v744
        %v746 = vsel %vm529, %v516, 0.0
        %v747 = vadd.f32 %v745, %v746
        %v748 = vsel %vm529, %v517, 0.0
        %v749 = vadd.f32 %v747, %v748
        %v750 = vsel %vm529, %v518, 0.0
        %v751 = vadd.f32 %v749, %v750
        %v752 = vsel %vm529, %v519, 0.0
        %v753 = vadd.f32 %v751, %v752
        %v754 = vsel %vm529, %v520, 0.0
        %v755 = vadd.f32 %v753, %v754
        %v756 = vsel %vm529, %v521, 0.0
        %v757 = vadd.f32 %v755, %v756
        %v758 = vsel %vm529, %v522, 0.0
        %v759 = vadd.f32 %v757, %v758
        %v760 = vsel %vm529, %v523, 0.0
        %v761 = vadd.f32 %v759, %v760
        %v762 = vsel %vm529, %v524, 0.0
        %v763 = vadd.f32 %v761, %v762
        %v764 = vsel %vm529, %v525, 0.0
        %v765 = vadd.f32 %v763, %v764
        %v766 = vsel %vm529, %v526, 0.0
        %v767 = vadd.f32 %v765, %v766
        %v768 = vsel %vm529, %v527, 0.0
        %v769 = vadd.f32 %v767, %v768
        %v770 = vrot.slane %v769, 4
        %v771 = vadd.f32 %v769, %v770
        %v772 = vrot.slane %v771, 2
        %v773 = vadd.f32 %v771, %v772
        %v774 = vrot.slane %v773, 1
        %v775 = vadd.f32 %v773, %v774
        %v776 = vadd.f32 %v706, %v775
        %777 = vst.msk [vmem:[#allocation8 + $0x2] sm:$0x1] %vm600, %v776
        %v778 = vld [vmem:[#allocation8 + $0x3] sm:$0x1]
        %v779 = vmul.f32 %v496, %v496
        %v780 = vmul.f32 %v497, %v497
        %v781 = vmul.f32 %v498, %v498
        %v782 = vmul.f32 %v499, %v499
        %v783 = vmul.f32 %v500, %v500
        %v784 = vmul.f32 %v501, %v501
        %v785 = vmul.f32 %v502, %v502
        %v786 = vmul.f32 %v503, %v503
        %v787 = vmul.f32 %v504, %v504
        %v788 = vmul.f32 %v505, %v505
        %v789 = vmul.f32 %v506, %v506
        %v790 = vmul.f32 %v507, %v507
        %v791 = vmul.f32 %v508, %v508
        %v792 = vmul.f32 %v509, %v509
        %v793 = vmul.f32 %v510, %v510
        %v794 = vmul.f32 %v511, %v511
        %v795 = vmul.f32 %v512, %v512
        %v796 = vmul.f32 %v513, %v513
        %v797 = vmul.f32 %v514, %v514
        %v798 = vmul.f32 %v515, %v515
        %v799 = vmul.f32 %v516, %v516
        %v800 = vmul.f32 %v517, %v517
        %v801 = vmul.f32 %v518, %v518
        %v802 = vmul.f32 %v519, %v519
        %v803 = vmul.f32 %v520, %v520
        %v804 = vmul.f32 %v521, %v521
        %v805 = vmul.f32 %v522, %v522
        %v806 = vmul.f32 %v523, %v523
        %v807 = vmul.f32 %v524, %v524
        %v808 = vmul.f32 %v525, %v525
        %v809 = vmul.f32 %v526, %v526
        %v810 = vmul.f32 %v527, %v527
        %v811 = vsel %vm529, %v779, 0.0
        %v812 = vsel %vm529, %v780, 0.0
        %v813 = vadd.f32 %v811, %v812
        %v814 = vsel %vm529, %v781, 0.0
        %v815 = vadd.f32 %v813, %v814
        %v816 = vsel %vm529, %v782, 0.0
        %v817 = vadd.f32 %v815, %v816
        %v818 = vsel %vm529, %v783, 0.0
        %v819 = vadd.f32 %v817, %v818
        %v820 = vsel %vm529, %v784, 0.0
        %v821 = vadd.f32 %v819, %v820
        %v822 = vsel %vm529, %v785, 0.0
        %v823 = vadd.f32 %v821, %v822
        %v824 = vsel %vm529, %v786, 0.0
        %v825 = vadd.f32 %v823, %v824
        %v826 = vsel %vm529, %v787, 0.0
        %v827 = vadd.f32 %v825, %v826
        %v828 = vsel %vm529, %v788, 0.0
        %v829 = vadd.f32 %v827, %v828
        %v830 = vsel %vm529, %v789, 0.0
        %v831 = vadd.f32 %v829, %v830
        %v832 = vsel %vm529, %v790, 0.0
        %v833 = vadd.f32 %v831, %v832
        %v834 = vsel %vm529, %v791, 0.0
        %v835 = vadd.f32 %v833, %v834
        %v836 = vsel %vm529, %v792, 0.0
        %v837 = vadd.f32 %v835, %v836
        %v838 = vsel %vm529, %v793, 0.0
        %v839 = vadd.f32 %v837, %v838
        %v840 = vsel %vm529, %v794, 0.0
        %v841 = vadd.f32 %v839, %v840
        %v842 = vsel %vm529, %v795, 0.0
        %v843 = vadd.f32 %v841, %v842
        %v844 = vsel %vm529, %v796, 0.0
        %v845 = vadd.f32 %v843, %v844
        %v846 = vsel %vm529, %v797, 0.0
        %v847 = vadd.f32 %v845, %v846
        %v848 = vsel %vm529, %v798, 0.0
        %v849 = vadd.f32 %v847, %v848
        %v850 = vsel %vm529, %v799, 0.0
        %v851 = vadd.f32 %v849, %v850
        %v852 = vsel %vm529, %v800, 0.0
        %v853 = vadd.f32 %v851, %v852
        %v854 = vsel %vm529, %v801, 0.0
        %v855 = vadd.f32 %v853, %v854
        %v856 = vsel %vm529, %v802, 0.0
        %v857 = vadd.f32 %v855, %v856
        %v858 = vsel %vm529, %v803, 0.0
        %v859 = vadd.f32 %v857, %v858
        %v860 = vsel %vm529, %v804, 0.0
        %v861 = vadd.f32 %v859, %v860
        %v862 = vsel %vm529, %v805, 0.0
        %v863 = vadd.f32 %v861, %v862
        %v864 = vsel %vm529, %v806, 0.0
        %v865 = vadd.f32 %v863, %v864
        %v866 = vsel %vm529, %v807, 0.0
        %v867 = vadd.f32 %v865, %v866
        %v868 = vsel %vm529, %v808, 0.0
        %v869 = vadd.f32 %v867, %v868
        %v870 = vsel %vm529, %v809, 0.0
        %v871 = vadd.f32 %v869, %v870
        %v872 = vsel %vm529, %v810, 0.0
        %v873 = vadd.f32 %v871, %v872
        %v874 = vrot.slane %v873, 4
        %v875 = vadd.f32 %v873, %v874
        %v876 = vrot.slane %v875, 2
        %v877 = vadd.f32 %v875, %v876
        %v878 = vrot.slane %v877, 1
        %v879 = vadd.f32 %v877, %v878
        %v880 = vadd.f32 %v778, %v879
        %881 = vst.msk [vmem:[#allocation8 + $0x3] sm:$0x1] %vm600, %v880
        // Predicated region
        $region49: #{tpu_custom_call.1} parent=31 // pred_check
          %p882 = pneg %p141
        $region50: #{tpu_custom_call.1} parent=31 // pred_check_branch
          %884 = sbr.rel (%p882) target = $region52
        $region51: #{tpu_custom_call.1} parent=31 // pred_region
          %s886 = ssub.s32 128, 128
          %887 = vsyncadd [#allocation4], %s886
          %s888 = smul.addr %s25, 128
          %s889 = scalar_lea.hbm %s3, %s888
          %s891 = sshll.u32 [#allocation8], 4
          %s892 = int_to_ptr.vmem [resolvable:$true] %s891
          %894 = dma.vmem_to_hbm [thread:$0]  %s892, 128, %s889, [#allocation4]
        $region52: #{tpu_custom_call.1} parent=31 // pred_fallthru
          _
        // Predicated region
        $region53: #{tpu_custom_call.1} parent=31 // pred_check
          %p895 = pneg %p141
        $region54: #{tpu_custom_call.1} parent=31 // pred_check_branch
          %897 = sbr.rel (%p895) target = $region56
        $region55: #{tpu_custom_call.1} parent=31 // pred_region
          %898 = dma.done [#allocation4], 128
        $region56: #{tpu_custom_call.1} parent=31 // pred_fallthru
          _
      $region32: #{tpu_custom_call.1} parent=5 // pred_fallthru
        _
      %p899 = scmp.le.s32.totalorder 2, %s16
      // Predicated region
      $region57: #{tpu_custom_call.1} parent=5 // pred_check
        %p900 = pneg %p899
      $region58: #{tpu_custom_call.1} parent=5 // pred_check_branch
        %902 = sbr.rel (%p900) target = $region60
      $region59: #{tpu_custom_call.1} parent=5 // pred_region
        %s903 = ssub.s32 %s16, 2
      $region60: #{tpu_custom_call.1} parent=5 // pred_fallthru
        _
    $region6: #{tpu_custom_call.1} parent=1 // loop_footer
      %s20 = sadd.s32 1, %s16
    $region7: #{tpu_custom_call.1} parent=1 // loop_footer_branch
      %15 = sbr.rel target = $region3
    $region8: #{tpu_custom_call.1} parent=1 // loop_exit
      _
    %904 = vsyncpa [#allocation3], 1
    %s905 = scalar_lea.sflag [#allocation3], 1
    %906 = vsyncpa %s905, 1
    %907 = vsyncpa [#allocation6], 1
    %s908 = scalar_lea.sflag [#allocation6], 1
    %909 = vsyncpa %s908, 1
    %910 = vsyncpa [#allocation4], 1
    %s911 = scalar_lea.sflag [#allocation4], 1
    %912 = vsyncpa %s911, 1

</llo_original>
